<compile_context>
chip_gen: v5e
topology: v5e:2x2
jax: 0.10.0
libtpu: 0.0.40
codegen_flags: <defaults>
</compile_context>

<pallas_src>
import functools

import jax
import jax.numpy as jnp
from jax.experimental import pallas as pl
from jax.experimental.pallas import tpu as pltpu


# --------------------------------------------------------------------------- #
# Kernel                                                                      #
# --------------------------------------------------------------------------- #
def _fused_heads_kernel(x_ref, w1t_ref, shift_ref, w2t_ref, b2_ref, o_ref,
                        *, compute_dtype):
    """Fused all-heads 1x1-conv stack on one pixel tile (channel-major).

    x_ref:     (1, C_in, TP)      pixel tile of the input feature map (NCHW)
    w1t_ref:   (Htot, C_in)       all heads' first conv weights, BN scale folded
    shift_ref: (Htot, 1)          folded BN shift (beta - mean * scale), f32
    w2t_ref:   (n_cls_pad, Htot)  block-diagonal final conv weights (transposed)
    b2_ref:    (n_cls_pad, 1)     concatenated final conv biases, f32
    o_ref:     (1, n_cls_pad, TP) all heads' outputs (already NCHW layout)
    """
    # In-kernel cast: keeps the HBM read at the input dtype (no extra XLA copy)
    # while feeding the MXU bf16 operands.  Accumulation stays f32.
    x = x_ref[0].astype(compute_dtype)                              # (C_in, TP)
    h = jnp.dot(w1t_ref[...], x, preferred_element_type=jnp.float32)
    h = jnp.maximum(h + shift_ref[...], 0.0)                        # BN shift + ReLU
    out = jnp.dot(w2t_ref[...], h.astype(compute_dtype),
                  preferred_element_type=jnp.float32)
    out = out + b2_ref[...]
    o_ref[0] = out.astype(o_ref.dtype)


def _run_fused(x_bcp, w1t, shift, w2t, b2, *, tile_p, compute_dtype):
    """x_bcp: (B, C_in, P), P % tile_p == 0. Returns (B, n_cls_pad, P) f32."""
    B, c_in, P = x_bcp.shape
    h_tot = w1t.shape[0]
    n_cls = w2t.shape[0]
    # Pixel axis LEADING: on v7x (2 TCs) megacore shards the leading parallel
    # axis; batch-leading would give it nothing to split at B=1.
    grid = (P // tile_p, B)

    in_itemsize = jnp.dtype(x_bcp.dtype).itemsize
    w_itemsize = jnp.dtype(w1t.dtype).itemsize
    cost = pl.CostEstimate(
        flops=2 * B * P * (c_in * h_tot + h_tot * n_cls),
        transcendentals=0,
        bytes_accessed=(B * c_in * P * in_itemsize          # activation read
                        + B * n_cls * P * 4                 # output write (f32)
                        + h_tot * c_in * w_itemsize         # W1
                        + n_cls * h_tot * w_itemsize        # W2
                        + (h_tot + n_cls) * 4),             # shift + bias
    )

    # VMEM budget: double-buffered input + output tiles, resident weights and
    # the f32 intermediates; x2 headroom, clamped to 48 MiB (safe under v7x's
    # 64 MiB physical VMEM; trivially under v5e/v6e's 128 MiB).
    need = (2 * c_in * tile_p * in_itemsize
            + 2 * n_cls * tile_p * 4
            + h_tot * (c_in + n_cls) * w_itemsize
            + 2 * h_tot * tile_p * 4)
    vmem_limit = int(min(48 * 1024 * 1024, max(2 * need, 32 * 1024 * 1024)))

    kernel = functools.partial(_fused_heads_kernel, compute_dtype=compute_dtype)
    return pl.pallas_call(
        kernel,
        out_shape=jax.ShapeDtypeStruct((B, n_cls, P), jnp.float32),
        grid_spec=pltpu.PrefetchScalarGridSpec(
            num_scalar_prefetch=0,
            grid=grid,
            in_specs=[
                pl.BlockSpec((1, c_in, tile_p), lambda p, b: (b, 0, p)),
                pl.BlockSpec((h_tot, c_in), lambda p, b: (0, 0)),
                pl.BlockSpec((h_tot, 1), lambda p, b: (0, 0)),
                pl.BlockSpec((n_cls, h_tot), lambda p, b: (0, 0)),
                pl.BlockSpec((n_cls, 1), lambda p, b: (0, 0)),
            ],
            out_specs=pl.BlockSpec((1, n_cls, tile_p), lambda p, b: (b, 0, p)),
        ),
        # No reduction axis; both axes independent -> megacore can shard.
        compiler_params=pltpu.CompilerParams(
            dimension_semantics=("parallel", "parallel"),
            vmem_limit_bytes=vmem_limit),
        cost_estimate=cost,
    )(x_bcp, w1t, shift, w2t, b2)


# --------------------------------------------------------------------------- #
# Wrapper                                                                     #
# --------------------------------------------------------------------------- #
def _round_up(n, m):
    return ((n + m - 1) // m) * m


def _choose_tile_p(P, max_tile):
    """Largest multiple-of-128 pixel tile <= max_tile that divides P exactly.

    Falls back to the full rounded-up extent (<= max_tile) if no divisor exists
    (real CenterPoint maps, e.g. 128x128, always have an exact divisor).
    """
    cap = min(max_tile, _round_up(P, 128))
    for t in range(cap, 127, -128):
        if P % t == 0:
            return t
    return cap  # no exact divisor -> wrapper pads up to a tile multiple


def _fuse_params(all_params, head_order, *, compute_dtype):
    """Fold BN scale into W1, concatenate heads, block-diagonalize W2."""
    w1_cols, shifts, w2t_blocks, biases, class_sizes = [], [], [], [], []
    for head in head_order:
        p = all_params[head]
        # Fold eval-mode BN scale into the first conv weight (free precompute).
        w1_cols.append(p["w1"] * p["scale"])                 # (C_in, head_conv)
        shifts.append(p["shift"].reshape(-1))                # (head_conv,)
        w2t_blocks.append(p["w2"].T)                         # (classes, head_conv)
        biases.append(p["b2"].reshape(-1))                   # (classes,)
        class_sizes.append(p["w2"].shape[1])
    w1t = jnp.concatenate(w1_cols, axis=1).T                 # (Htot, C_in)
    shift = jnp.concatenate(shifts).reshape(-1, 1)           # (Htot, 1)  f32
    w2t = jax.scipy.linalg.block_diag(*w2t_blocks)           # (sum_cls, Htot)
    b2 = jnp.concatenate(biases).reshape(-1, 1)              # (sum_cls, 1) f32
    # Pad total class count to a multiple of 8: sublane-aligned output stores
    # and an aligned M tile for the second GEMM.  Zero rows cost nothing.
    n_cls = w2t.shape[0]
    n_cls_pad = _round_up(max(n_cls, 8), 8)
    if n_cls_pad != n_cls:
        w2t = jnp.pad(w2t, ((0, n_cls_pad - n_cls), (0, 0)))
        b2 = jnp.pad(b2, ((0, n_cls_pad - n_cls), (0, 0)))
    # Weights are tiny -> casting them host-side is free; shift/bias stay f32.
    return (w1t.astype(compute_dtype), shift,
            w2t.astype(compute_dtype), b2, class_sizes)


def separate_head_forward(x_nchw, all_params, *, compute_dtype=jnp.bfloat16,
                          max_tile=None):
    """Forward of SeparateHead (all heads fused into one Pallas call).

    x_nchw: (B, C_in, H, W) in its native dtype (f32 or bf16 from the backbone;
        it is NOT re-cast in HBM -- any dtype conversion happens in-kernel).
    compute_dtype: operand dtype fed to both MXU dots (default bf16, beneficial
        on v5e/v6e/v7x alike); accumulation is always f32.
    Returns dict[head] -> (B, classes, H, W) float32 (NCHW), matching PyTorch.
    """
    B, C, H, W = x_nchw.shape
    P = H * W
    head_order = list(all_params.keys())
    w1t, shift, w2t, b2, class_sizes = _fuse_params(
        all_params, head_order, compute_dtype=compute_dtype)

    x = x_nchw.reshape(B, C, P)                 # NCHW, no transpose needed
    in_itemsize = jnp.dtype(x.dtype).itemsize
    if max_tile is None:
        # Budget double-buffered tiles against the tightest generation budgets
        # (v5e 16 MiB scoped default, v7x 64 MiB physical): 1024 pixels for f32
        # inputs, 2048 for bf16 inputs.
        max_tile = 1024 if in_itemsize >= 4 else 2048
    tile_p = _choose_tile_p(P, max_tile)
    P_pad = pl.cdiv(P, tile_p) * tile_p
    if P_pad != P:
        # TODO(synk): handle the ragged final pixel tile in-kernel (masked tail
        # lanes) instead of materializing a padded activation copy in HBM.
        x = jnp.pad(x, ((0, 0), (0, 0), (0, P_pad - P)))

    out = _run_fused(x, w1t, shift, w2t, b2,
                     tile_p=tile_p, compute_dtype=compute_dtype)

    ret = {}
    lo = 0
    for head, nc in zip(head_order, class_sizes):
        ret[head] = out[:, lo:lo + nc, :P].reshape(B, nc, H, W)
        lo += nc
    return ret


# --------------------------------------------------------------------------- #
# Parameters & reference                                                      #
# --------------------------------------------------------------------------- #
def make_params(key, in_channels, heads, head_conv, init_bias=-2.19):
    """Deterministic synthetic parameters for every head.

    Each head (classes, num_conv=2):
      - ConvModule: Conv2d 1x1 (in_channels -> head_conv, no bias) + BN + ReLU
        (BN folded to scale/shift as in eval mode)
      - Conv2d 1x1 (head_conv -> classes, bias=True)
      - heatmap final bias filled with init_bias (-2.19), as in init_weights().
    """
    # TODO(synk): only num_conv == 2 (standard CenterPoint config) is fused;
    # training-mode BatchNorm (batch statistics) has no equivalent here.
    all_params = {}
    eps = 1e-5
    for head, (classes, num_conv) in heads.items():
        assert num_conv == 2, "kernel fuses exactly one ConvModule + final conv"
        key, k1, k2, k3, k4, k5, k6 = jax.random.split(key, 7)
        w1 = jax.random.normal(k1, (in_channels, head_conv), jnp.float32) * 0.05
        gamma = 1.0 + 0.1 * jax.random.normal(k2, (head_conv,), jnp.float32)
        beta = 0.1 * jax.random.normal(k3, (head_conv,), jnp.float32)
        mean = 0.1 * jax.random.normal(k4, (head_conv,), jnp.float32)
        var = jnp.abs(1.0 + 0.1 * jax.random.normal(k5, (head_conv,), jnp.float32))
        scale = gamma / jnp.sqrt(var + eps)
        shift = beta - mean * scale
        w2 = jax.random.normal(k6, (head_conv, classes), jnp.float32) * 0.05
        if head == "heatmap":
            b2 = jnp.full((classes,), init_bias, jnp.float32)
        else:
            b2 = jnp.zeros((classes,), jnp.float32)
        all_params[head] = dict(
            w1=w1,
            scale=scale.reshape(1, head_conv),
            shift=shift.reshape(1, head_conv),
            w2=w2,
            b2=b2.reshape(1, classes),
        )
    return all_params


def _reference_forward(x_nchw, all_params):
    """Plain-JAX reference (f32) for a sanity check."""
    B, C, H, W = x_nchw.shape
    x_flat = jnp.transpose(x_nchw, (0, 2, 3, 1)).reshape(B * H * W, C)
    ret = {}
    for head, p in all_params.items():
        h = jnp.maximum(x_flat @ p["w1"] * p["scale"] + p["shift"], 0.0)
        o = h @ p["w2"] + p["b2"]
        ret[head] = jnp.transpose(o.reshape(B, H, W, -1), (0, 3, 1, 2))
    return ret


# --------------------------------------------------------------------------- #
# Demo / correctness check                                                    #
# --------------------------------------------------------------------------- #
if __name__ == "__main__":
    # Small shapes consistent with the module (real model uses [B, 512, 128, 128]).
    B, C_in, H, W = 2, 32, 16, 16
    head_conv = 32
    heads = {
        "reg": (2, 2),
        "height": (1, 2),
        "dim": (3, 2),
        "rot": (2, 2),
        "vel": (2, 2),
        "heatmap": (4, 2),
    }

    key = jax.random.PRNGKey(0)
    key, kx = jax.random.split(key)
    x = jax.random.normal(kx, (B, C_in, H, W), jnp.float32)
    params = make_params(key, C_in, heads, head_conv)

    ref = _reference_forward(x, params)

    # f32 compute path: strict check against the plain-JAX reference.
    out_f32 = separate_head_forward(x, params, compute_dtype=jnp.float32)
    out_f32 = jax.tree_util.tree_map(jax.block_until_ready, out_f32)
    for head in heads:
        assert out_f32[head].shape == (B, heads[head][0], H, W), head
        err = float(jnp.max(jnp.abs(out_f32[head] - ref[head])))
        assert err < 1e-4, (head, err)

    # Default bf16 compute path (in-kernel cast, f32 accumulation): loose tol.
    out_bf16 = separate_head_forward(x, params)
    out_bf16 = jax.tree_util.tree_map(jax.block_until_ready, out_bf16)
    for head in heads:
        assert out_bf16[head].shape == (B, heads[head][0], H, W), head
        err = float(jnp.max(jnp.abs(out_bf16[head] - ref[head])))
        assert err < 2e-2, (head, err)

    print("KERNEL_OK")
</pallas_src>

<mosaic_0001>
module attributes {stable_mosaic.version = 11 : i64} {
  func.func @_fused_heads_kernel(%arg0: i32, %arg1: i32, %arg2: memref<1x32x256xf32, #tpu.memory_space<vmem>>, %arg3: memref<192x32xf32, #tpu.memory_space<vmem>>, %arg4: memref<192x1xf32, #tpu.memory_space<vmem>>, %arg5: memref<16x192xf32, #tpu.memory_space<vmem>>, %arg6: memref<16x1xf32, #tpu.memory_space<vmem>>, %arg7: memref<1x16x256xf32, #tpu.memory_space<vmem>>) attributes {dimension_semantics = [#tpu.dimension_semantics<parallel>, #tpu.dimension_semantics<parallel>], iteration_bounds = array<i64: 1, 2>, scalar_prefetch = 0 : i64, scratch_operands = 0 : i64, tpu.core_type = #tpu.core_type<tc>, window_params = [{transform_indices = @transform_0, window_bounds = array<i64: 1, 32, 256>}, {pipeline_mode = #tpu.pipeline_mode<synchronous>, transform_indices = @transform_1, window_bounds = array<i64: 192, 32>}, {pipeline_mode = #tpu.pipeline_mode<synchronous>, transform_indices = @transform_2, window_bounds = array<i64: 192, 1>}, {pipeline_mode = #tpu.pipeline_mode<synchronous>, transform_indices = @transform_3, window_bounds = array<i64: 16, 192>}, {pipeline_mode = #tpu.pipeline_mode<synchronous>, transform_indices = @transform_4, window_bounds = array<i64: 16, 1>}, {transform_indices = @transform_5, window_bounds = array<i64: 1, 16, 256>}]} {
    %c0 = arith.constant 0 : index
    %c0_0 = arith.constant 0 : index
    %c0_1 = arith.constant 0 : index
    %0 = vector.load %arg2[%c0, %c0_0, %c0_1] : memref<1x32x256xf32, #tpu.memory_space<vmem>>, vector<1x32x256xf32>
    %1 = vector.shape_cast %0 : vector<1x32x256xf32> to vector<32x256xf32>
    %c0_2 = arith.constant 0 : index
    %c0_3 = arith.constant 0 : index
    %2 = vector.load %arg3[%c0_2, %c0_3] : memref<192x32xf32, #tpu.memory_space<vmem>>, vector<192x32xf32>
    %cst = arith.constant dense<0.000000e+00> : vector<192x256xf32>
    %3 = tpu.matmul %2, %1, %cst {dimension_numbers = #tpu.dot_dimension_numbers<[1], [0], [0], [1], [0, 0, 1, 1], [], []>} : vector<192x32xf32>, vector<32x256xf32>, vector<192x256xf32> -> vector<192x256xf32>
    %c0_4 = arith.constant 0 : index
    %c0_5 = arith.constant 0 : index
    %4 = vector.load %arg4[%c0_4, %c0_5] : memref<192x1xf32, #tpu.memory_space<vmem>>, vector<192x1xf32>
    %5 = vector.broadcast %4 : vector<192x1xf32> to vector<192x256xf32>
    %6 = arith.addf %3, %5 : vector<192x256xf32>
    %cst_6 = arith.constant 0.000000e+00 : f32
    %7 = vector.broadcast %cst_6 : f32 to vector<192x256xf32>
    %8 = arith.maximumf %6, %7 : vector<192x256xf32>
    %c0_7 = arith.constant 0 : index
    %c0_8 = arith.constant 0 : index
    %9 = vector.load %arg5[%c0_7, %c0_8] : memref<16x192xf32, #tpu.memory_space<vmem>>, vector<16x192xf32>
    %cst_9 = arith.constant dense<0.000000e+00> : vector<16x256xf32>
    %10 = tpu.matmul %9, %8, %cst_9 {dimension_numbers = #tpu.dot_dimension_numbers<[1], [0], [0], [1], [0, 0, 1, 1], [], []>} : vector<16x192xf32>, vector<192x256xf32>, vector<16x256xf32> -> vector<16x256xf32>
    %c0_10 = arith.constant 0 : index
    %c0_11 = arith.constant 0 : index
    %11 = vector.load %arg6[%c0_10, %c0_11] : memref<16x1xf32, #tpu.memory_space<vmem>>, vector<16x1xf32>
    %12 = vector.broadcast %11 : vector<16x1xf32> to vector<16x256xf32>
    %13 = arith.addf %10, %12 : vector<16x256xf32>
    %c0_12 = arith.constant 0 : index
    %c0_13 = arith.constant 0 : index
    %c0_14 = arith.constant 0 : index
    %14 = vector.load %arg7[%c0_12, %c0_13, %c0_14] : memref<1x16x256xf32, #tpu.memory_space<vmem>>, vector<1x16x256xf32>
    %15 = vector.shape_cast %14 : vector<1x16x256xf32> to vector<16x256xf32>
    %16 = vector.shape_cast %13 : vector<16x256xf32> to vector<1x16x256xf32>
    tpu.vector_store %arg7[%c0_12, %c0_13, %c0_14], %16 {strides = array<i32>} : memref<1x16x256xf32, #tpu.memory_space<vmem>>, vector<1x16x256xf32>,
    return
  }
  func.func @transform_0(%arg0: i32, %arg1: i32) -> (i32, i32, i32) {
    %c0_i32 = arith.constant 0 : i32
    %c0_i32_0 = arith.constant 0 : i32
    return %arg1, %c0_i32, %arg0 : i32, i32, i32
  }
  func.func @transform_1(%arg0: i32, %arg1: i32) -> (i32, i32) {
    %c0_i32 = arith.constant 0 : i32
    %c0_i32_0 = arith.constant 0 : i32
    %c0_i32_1 = arith.constant 0 : i32
    return %c0_i32, %c0_i32_0 : i32, i32
  }
  func.func @transform_2(%arg0: i32, %arg1: i32) -> (i32, i32) {
    %c0_i32 = arith.constant 0 : i32
    %c0_i32_0 = arith.constant 0 : i32
    %c0_i32_1 = arith.constant 0 : i32
    return %c0_i32, %c0_i32_0 : i32, i32
  }
  func.func @transform_3(%arg0: i32, %arg1: i32) -> (i32, i32) {
    %c0_i32 = arith.constant 0 : i32
    %c0_i32_0 = arith.constant 0 : i32
    %c0_i32_1 = arith.constant 0 : i32
    return %c0_i32, %c0_i32_0 : i32, i32
  }
  func.func @transform_4(%arg0: i32, %arg1: i32) -> (i32, i32) {
    %c0_i32 = arith.constant 0 : i32
    %c0_i32_0 = arith.constant 0 : i32
    %c0_i32_1 = arith.constant 0 : i32
    return %c0_i32, %c0_i32_0 : i32, i32
  }
  func.func @transform_5(%arg0: i32, %arg1: i32) -> (i32, i32, i32) {
    %c0_i32 = arith.constant 0 : i32
    %c0_i32_0 = arith.constant 0 : i32
    return %arg1, %c0_i32, %arg0 : i32, i32, i32
  }
}

</mosaic_0001>

<llo_original>
// kernel: tpu_custom_call.1
$region0: #{tpu_custom_call.1}
  #allocation0 [shape = 'u32[]', space=smem, size = 0x4, offset = 0x4, fixed_abs, tag = 'smem constant byte address 0x4 - core index']
  #allocation1 [shape = 'u32[72,128]{1,0:T(1,128)}', space=vmem, size = 0x9000, scoped, tag = 'internal scratch']
  %s0 = inlined_call_operand.vmem [shape: f32[2,32,256], index: 0, kind: input, shape index: {}]
  %s1 = inlined_call_operand.vmem [shape: f32[192,32], index: 1, kind: input, shape index: {}]
  %s2 = inlined_call_operand.vmem [shape: f32[192,1], index: 2, kind: input, shape index: {}]
  %s3 = inlined_call_operand.vmem [shape: f32[16,192], index: 3, kind: input, shape index: {}]
  %s4 = inlined_call_operand.vmem [shape: f32[16,1], index: 4, kind: input, shape index: {}]
  %s5 = inlined_call_operand.hbm [shape: f32[2,16,256], index: 5, kind: output, shape index: {}]
  %s6 = sld [smem:[#allocation0]]
  $region53: #{tpu_custom_call.1} parent=0
    _
  %s8 = ssub.s32 1, %s6
  %s9 = scalar_select 0, %s8, %s6
  $region1: #{tpu_custom_call.1} parent=0
    #allocation2 [shape = 'u8[32768]{0}', space=vmem, size = 0x8000, scoped, tag = 'output window, operand 0']
    #allocation3 [shape = 's32[2]{0}', space=sflag, size = 0x8, scoped, tag = 'scoped memory for tpu_custom_call.1']
    %10 = vsyncpa [#allocation3], 0
    %s11 = scalar_lea.sflag [#allocation3], 1
    %12 = vsyncpa %s11, 0
    loop: start=0, step=1, limit=4
    $region2: #{tpu_custom_call.1} parent=1 // loop_pre_header
      _
    $region3: #{tpu_custom_call.1} parent=1 // loop_header
      %s14 = sphi 0, %s18
      %p15 = scmp.ge.s32.totalorder %s14, 4
      %s21 = sphi 0, %s33
      %s22 = sphi 0, %s29
      %s23 = sphi 0, %s21
      %s24 = sphi 0, %s22
      %s25 = sphi 0, %s23
      %s26 = sphi 0, %s24
      %s38 = sphi 0, %s40
      %s41 = sphi 0, %s38
      %s42 = sphi 0, %s41
      %s58 = sphi 0, %s42
      %s62 = sphi 0, %s62
      %s64 = sphi 0, %s62
      %s65 = sphi 0, %s64
      %s79 = sphi 0, %s65
      %s83 = sphi 0, %s83
      %s85 = sphi 0, %s83
      %s86 = sphi 0, %s85
      %s100 = sphi 0, %s86
      %s104 = sphi 0, %s104
      %s106 = sphi 0, %s104
      %s107 = sphi 0, %s106
      %s121 = sphi 0, %s107
      %s125 = sphi 0, %s125
      %s127 = sphi 0, %s125
      %s128 = sphi 0, %s127
      %s142 = sphi 0, %s128
      %s150 = sphi 0, %s152
      %s153 = sphi 0, %s150
      %s154 = sphi 0, %s153
      %s170 = sphi 0, %s154
    $region4: #{tpu_custom_call.1} parent=1 // loop_header_branch
      %17 = sbr.rel (%p15) target = $region8
    $region5: #{tpu_custom_call.1} parent=1 // loop_body
      %s19 = ssub.s32 %s14, 1
      %s20 = ssub.s32 %s14, 2
      %s27 = sadd.s32 1, %s22
      %p28 = scmp.ge.s32.totalorder %s27, 2
      %s29 = scalar_select %p28, 0, %s27
      %s30 = sadd.s32 1, %s21
      %s31 = scalar_select %p28, %s30, %s21
      %p32 = scmp.ge.s32.totalorder %s31, 1
      %s33 = scalar_select %p32, 0, %s31
      %s34 = ssub.s32 %s22, %s29
      %s35 = ssub.s32 %s21, %s33
      %s36 = sor.u32 %s34, %s35
      %p37 = scmp.eq.s32.totalorder %s36, 0
      %s39 = sadd.s32 %s38, 1
      %s40 = scalar_select %p37, %s38, %s39
      %p43 = pneg %p37
      %p44 = scmp.eq.s32.totalorder %s14, 1
      %p45 = por %p43, %p44
      %p46 = scmp.ne.s32.totalorder %s38, %s41
      %p47 = scmp.eq.s32.totalorder %s14, 0
      %p48 = por %p46, %p47
      %p49 = scmp.ne.s32.totalorder %s38, %s41
      %p50 = scmp.eq.s32.totalorder %s19, 1
      %p51 = por %p49, %p50
      %p52 = scmp.ne.s32.totalorder %s41, %s42
      %p53 = scmp.eq.s32.totalorder %s19, 0
      %p54 = por %p52, %p53
      %p55 = scmp.ne.s32.totalorder %s41, %s42
      %p56 = scmp.eq.s32.totalorder %s20, 1
      %p57 = por %p55, %p56
      %p59 = scmp.ne.s32.totalorder %s42, %s58
      %p60 = scmp.eq.s32.totalorder %s20, 0
      %p61 = por %p59, %p60
      %s63 = sadd.s32 %s62, 1
      %p66 = scmp.eq.s32.totalorder %s14, 1
      %p67 = scmp.ne.s32.totalorder %s62, %s64
      %p68 = scmp.eq.s32.totalorder %s14, 0
      %p69 = por %p67, %p68
      %p70 = scmp.ne.s32.totalorder %s62, %s64
      %p71 = scmp.eq.s32.totalorder %s19, 1
      %p72 = por %p70, %p71
      %p73 = scmp.ne.s32.totalorder %s64, %s65
      %p74 = scmp.eq.s32.totalorder %s19, 0
      %p75 = por %p73, %p74
      %p76 = scmp.ne.s32.totalorder %s64, %s65
      %p77 = scmp.eq.s32.totalorder %s20, 1
      %p78 = por %p76, %p77
      %p80 = scmp.ne.s32.totalorder %s65, %s79
      %p81 = scmp.eq.s32.totalorder %s20, 0
      %p82 = por %p80, %p81
      %s84 = sadd.s32 %s83, 1
      %p87 = scmp.eq.s32.totalorder %s14, 1
      %p88 = scmp.ne.s32.totalorder %s83, %s85
      %p89 = scmp.eq.s32.totalorder %s14, 0
      %p90 = por %p88, %p89
      %p91 = scmp.ne.s32.totalorder %s83, %s85
      %p92 = scmp.eq.s32.totalorder %s19, 1
      %p93 = por %p91, %p92
      %p94 = scmp.ne.s32.totalorder %s85, %s86
      %p95 = scmp.eq.s32.totalorder %s19, 0
      %p96 = por %p94, %p95
      %p97 = scmp.ne.s32.totalorder %s85, %s86
      %p98 = scmp.eq.s32.totalorder %s20, 1
      %p99 = por %p97, %p98
      %p101 = scmp.ne.s32.totalorder %s86, %s100
      %p102 = scmp.eq.s32.totalorder %s20, 0
      %p103 = por %p101, %p102
      %s105 = sadd.s32 %s104, 1
      %p108 = scmp.eq.s32.totalorder %s14, 1
      %p109 = scmp.ne.s32.totalorder %s104, %s106
      %p110 = scmp.eq.s32.totalorder %s14, 0
      %p111 = por %p109, %p110
      %p112 = scmp.ne.s32.totalorder %s104, %s106
      %p113 = scmp.eq.s32.totalorder %s19, 1
      %p114 = por %p112, %p113
      %p115 = scmp.ne.s32.totalorder %s106, %s107
      %p116 = scmp.eq.s32.totalorder %s19, 0
      %p117 = por %p115, %p116
      %p118 = scmp.ne.s32.totalorder %s106, %s107
      %p119 = scmp.eq.s32.totalorder %s20, 1
      %p120 = por %p118, %p119
      %p122 = scmp.ne.s32.totalorder %s107, %s121
      %p123 = scmp.eq.s32.totalorder %s20, 0
      %p124 = por %p122, %p123
      %s126 = sadd.s32 %s125, 1
      %p129 = scmp.eq.s32.totalorder %s14, 1
      %p130 = scmp.ne.s32.totalorder %s125, %s127
      %p131 = scmp.eq.s32.totalorder %s14, 0
      %p132 = por %p130, %p131
      %p133 = scmp.ne.s32.totalorder %s125, %s127
      %p134 = scmp.eq.s32.totalorder %s19, 1
      %p135 = por %p133, %p134
      %p136 = scmp.ne.s32.totalorder %s127, %s128
      %p137 = scmp.eq.s32.totalorder %s19, 0
      %p138 = por %p136, %p137
      %p139 = scmp.ne.s32.totalorder %s127, %s128
      %p140 = scmp.eq.s32.totalorder %s20, 1
      %p141 = por %p139, %p140
      %p143 = scmp.ne.s32.totalorder %s128, %s142
      %p144 = scmp.eq.s32.totalorder %s20, 0
      %p145 = por %p143, %p144
      %s146 = ssub.s32 %s22, %s29
      %s147 = ssub.s32 %s21, %s33
      %s148 = sor.u32 %s146, %s147
      %p149 = scmp.eq.s32.totalorder %s148, 0
      %s151 = sadd.s32 %s150, 1
      %s152 = scalar_select %p149, %s150, %s151
      %p155 = pneg %p149
      %p156 = scmp.eq.s32.totalorder %s14, 1
      %p157 = por %p155, %p156
      %p158 = scmp.ne.s32.totalorder %s150, %s153
      %p159 = scmp.eq.s32.totalorder %s14, 0
      %p160 = por %p158, %p159
      %p161 = scmp.ne.s32.totalorder %s150, %s153
      %p162 = scmp.eq.s32.totalorder %s19, 1
      %p163 = por %p161, %p162
      %p164 = scmp.ne.s32.totalorder %s153, %s154
      %p165 = scmp.eq.s32.totalorder %s19, 0
      %p166 = por %p164, %p165
      %p167 = scmp.ne.s32.totalorder %s153, %s154
      %p168 = scmp.eq.s32.totalorder %s20, 1
      %p169 = por %p167, %p168
      %p171 = scmp.ne.s32.totalorder %s154, %s170
      %p172 = scmp.eq.s32.totalorder %s20, 0
      %p173 = por %p171, %p172
      %p174 = scmp.le.s32.totalorder 1, %s14
      %p175 = scmp.lt.s32.totalorder %s14, 3
      %p176 = pnand %p174, %p175
      %p177 = pneg %p176
      // Predicated region
      $region9: #{tpu_custom_call.1} parent=5 // pred_check
        _
      $region10: #{tpu_custom_call.1} parent=5 // pred_check_branch
        %179 = sbr.rel (%p176) target = $region12
      $region11: #{tpu_custom_call.1} parent=5 // pred_region
        %s180 = ssub.s32 %s14, 1
        // Predicated region
        $region13: #{tpu_custom_call.1} parent=11 // pred_check
          %p181 = pneg %p75
        $region14: #{tpu_custom_call.1} parent=11 // pred_check_branch
          %183 = sbr.rel (%p181) target = $region16
        $region15: #{tpu_custom_call.1} parent=11 // pred_region
          _
        $region16: #{tpu_custom_call.1} parent=11 // pred_fallthru
          _
        // Predicated region
        $region17: #{tpu_custom_call.1} parent=11 // pred_check
          %p184 = pneg %p96
        $region18: #{tpu_custom_call.1} parent=11 // pred_check_branch
          %186 = sbr.rel (%p184) target = $region20
        $region19: #{tpu_custom_call.1} parent=11 // pred_region
          _
        $region20: #{tpu_custom_call.1} parent=11 // pred_fallthru
          _
        // Predicated region
        $region21: #{tpu_custom_call.1} parent=11 // pred_check
          %p187 = pneg %p117
        $region22: #{tpu_custom_call.1} parent=11 // pred_check_branch
          %189 = sbr.rel (%p187) target = $region24
        $region23: #{tpu_custom_call.1} parent=11 // pred_region
          _
        $region24: #{tpu_custom_call.1} parent=11 // pred_fallthru
          _
        // Predicated region
        $region25: #{tpu_custom_call.1} parent=11 // pred_check
          %p190 = pneg %p138
        $region26: #{tpu_custom_call.1} parent=11 // pred_check_branch
          %192 = sbr.rel (%p190) target = $region28
        $region27: #{tpu_custom_call.1} parent=11 // pred_region
          _
        $region28: #{tpu_custom_call.1} parent=11 // pred_fallthru
          _
      $region12: #{tpu_custom_call.1} parent=5 // pred_fallthru
        _
      %p193 = scmp.lt.s32.totalorder %s14, 2
      // Predicated region
      $region29: #{tpu_custom_call.1} parent=5 // pred_check
        %p194 = pneg %p193
      $region30: #{tpu_custom_call.1} parent=5 // pred_check_branch
        %196 = sbr.rel (%p194) target = $region32
      $region31: #{tpu_custom_call.1} parent=5 // pred_region
        // Predicated region
        $region33: #{tpu_custom_call.1} parent=31 // pred_check
          %p197 = pneg %p48
        $region34: #{tpu_custom_call.1} parent=31 // pred_check_branch
          %199 = sbr.rel (%p197) target = $region36
        $region35: #{tpu_custom_call.1} parent=31 // pred_region
          %s200 = smul.u32 2, %s21
          %p201 = scmp.lt.s32.totalorder %s22, 1
          %s202 = scalar_select %p201, %s22, 1
          %p203 = scmp.lt.s32.totalorder %s200, 1
          %s204 = scalar_select %p203, %s200, 1
          %s205 = smul.addr %s202, 8
          %s206 = sadd.s32 %s204, %s205
          %s207 = smul.addr %s206, 8
          %s208 = scalar_lea.vmem %s0, %s207
          %s209 = smul.u32 2, %s21
        $region36: #{tpu_custom_call.1} parent=31 // pred_fallthru
          _
      $region32: #{tpu_custom_call.1} parent=5 // pred_fallthru
        _
      %p210 = scmp.le.s32.totalorder 1, %s14
      %p211 = scmp.lt.s32.totalorder %s14, 3
      %p212 = pnand %p210, %p211
      %p213 = pneg %p212
      // Predicated region
      $region37: #{tpu_custom_call.1} parent=5 // pred_check
        _
      $region38: #{tpu_custom_call.1} parent=5 // pred_check_branch
        %215 = sbr.rel (%p212) target = $region40
      $region39: #{tpu_custom_call.1} parent=5 // pred_region
        %s216 = ssub.s32 %s14, 1
        %s217 = smul.u32 2, %s23
        %p218 = scmp.lt.s32.totalorder %s24, 1
        %s219 = scalar_select %p218, %s24, 1
        %p220 = scmp.lt.s32.totalorder %s217, 1
        %s221 = scalar_select %p220, %s217, 1
        %s222 = smul.addr %s219, 8
        %s223 = sadd.s32 %s221, %s222
        %s224 = smul.addr %s223, 8
        %s225 = scalar_lea.vmem %s0, %s224
        %p226 = pneg %p54
        %p227 = pneg %p51
        %p228 = pneg %p75
        %p229 = pneg %p72
        %p230 = pneg %p96
        %p231 = pneg %p93
        %p232 = pneg %p117
        %p233 = pneg %p114
        %p234 = pneg %p138
        %p235 = pneg %p135
        %p236 = pneg %p166
        %p237 = pneg %p163
        %s238 = sand.u32 %s153, 1
        %s239 = scalar_lea.sflag [#allocation3], %s238
        %s240 = sand.u32 %s153, 1
        %s241 = smul.addr %s240, 32
        %s242 = scalar_lea.vmem [#allocation2], %s241
        %s243 = smul.u32 2, %s23
        %p244 = scmp.lt.s32.totalorder %s24, 1
        %s245 = scalar_select %p244, %s24, 1
        %p246 = scmp.lt.s32.totalorder %s243, 1
        %s247 = scalar_select %p246, %s243, 1
        %s248 = smul.addr %s245, 8
        %s249 = sadd.s32 %s247, %s248
        %s250 = smul.addr %s249, 8
        %s251 = scalar_lea.vmem %s0, %s250
        %s252 = smul.u32 2, %s23
        %s253 = smul.u32 2, %s23
        %v254 = vld [vmem:[%s251] sm:$0xff]
        %v255 = vld [vmem:[%s251 + $0x8] sm:$0xff]
        %v256 = vld [vmem:[%s251 + $0x10] sm:$0xff]
        %v257 = vld [vmem:[%s251 + $0x18] sm:$0xff]
        %v258 = vld [vmem:[%s251 + $0x20] sm:$0xff]
        %v259 = vld [vmem:[%s251 + $0x28] sm:$0xff]
        %v260 = vld [vmem:[%s251 + $0x30] sm:$0xff]
        %v261 = vld [vmem:[%s251 + $0x38] sm:$0xff]
        %v262 = vld [vmem:[%s1] sm:$0xff]
        %v263 = vld [vmem:[%s1 + $0x8] sm:$0xff]
        %v264 = vld [vmem:[%s1 + $0x10] sm:$0xff]
        %v265 = vld [vmem:[%s1 + $0x18] sm:$0xff]
        %v266 = vld [vmem:[%s1 + $0x20] sm:$0xff]
        %v267 = vld [vmem:[%s1 + $0x28] sm:$0xff]
        %v268 = vld [vmem:[%s1 + $0x30] sm:$0xff]
        %v269 = vld [vmem:[%s1 + $0x38] sm:$0xff]
        %v270 = vld [vmem:[%s1 + $0x40] sm:$0xff]
        %v271 = vld [vmem:[%s1 + $0x48] sm:$0xff]
        %v272 = vld [vmem:[%s1 + $0x50] sm:$0xff]
        %v273 = vld [vmem:[%s1 + $0x58] sm:$0xff]
        %v274 = vld [vmem:[%s1 + $0x60] sm:$0xff]
        %v275 = vld [vmem:[%s1 + $0x68] sm:$0xff]
        %v276 = vld [vmem:[%s1 + $0x70] sm:$0xff]
        %v277 = vld [vmem:[%s1 + $0x78] sm:$0xff]
        %v278 = vld [vmem:[%s1 + $0x80] sm:$0xff]
        %v279 = vld [vmem:[%s1 + $0x88] sm:$0xff]
        %v280 = vld [vmem:[%s1 + $0x90] sm:$0xff]
        %v281 = vld [vmem:[%s1 + $0x98] sm:$0xff]
        %v282 = vld [vmem:[%s1 + $0xa0] sm:$0xff]
        %v283 = vld [vmem:[%s1 + $0xa8] sm:$0xff]
        %v284 = vld [vmem:[%s1 + $0xb0] sm:$0xff]
        %v285 = vld [vmem:[%s1 + $0xb8] sm:$0xff]
        %v286 = vld [vmem:[%s2] sm:$0xff]
        %v287 = vld [vmem:[%s2 + $0x8] sm:$0xff]
        %v288 = vld [vmem:[%s2 + $0x10] sm:$0xff]
        %v289 = vld [vmem:[%s2 + $0x18] sm:$0xff]
        %v290 = vld [vmem:[%s2 + $0x20] sm:$0xff]
        %v291 = vld [vmem:[%s2 + $0x28] sm:$0xff]
        %v292 = vld [vmem:[%s2 + $0x30] sm:$0xff]
        %v293 = vld [vmem:[%s2 + $0x38] sm:$0xff]
        %v294 = vld [vmem:[%s2 + $0x40] sm:$0xff]
        %v295 = vld [vmem:[%s2 + $0x48] sm:$0xff]
        %v296 = vld [vmem:[%s2 + $0x50] sm:$0xff]
        %v297 = vld [vmem:[%s2 + $0x58] sm:$0xff]
        %v298 = vld [vmem:[%s2 + $0x60] sm:$0xff]
        %v299 = vld [vmem:[%s2 + $0x68] sm:$0xff]
        %v300 = vld [vmem:[%s2 + $0x70] sm:$0xff]
        %v301 = vld [vmem:[%s2 + $0x78] sm:$0xff]
        %v302 = vld [vmem:[%s2 + $0x80] sm:$0xff]
        %v303 = vld [vmem:[%s2 + $0x88] sm:$0xff]
        %v304 = vld [vmem:[%s2 + $0x90] sm:$0xff]
        %v305 = vld [vmem:[%s2 + $0x98] sm:$0xff]
        %v306 = vld [vmem:[%s2 + $0xa0] sm:$0xff]
        %v307 = vld [vmem:[%s2 + $0xa8] sm:$0xff]
        %v308 = vld [vmem:[%s2 + $0xb0] sm:$0xff]
        %v309 = vld [vmem:[%s2 + $0xb8] sm:$0xff]
        %311 = vset.pattern.permute.xlu0 0
        %312 = vperm.xlu0 %311, %v286
        %v313 = vpop.permute.xlu0 %312
        %316 = vset.pattern.permute.xlu0 0
        %317 = vperm.xlu0 %316, %v287
        %v318 = vpop.permute.xlu0 %317
        %321 = vset.pattern.permute.xlu0 0
        %322 = vperm.xlu0 %321, %v288
        %v323 = vpop.permute.xlu0 %322
        %326 = vset.pattern.permute.xlu0 0
        %327 = vperm.xlu0 %326, %v289
        %v328 = vpop.permute.xlu0 %327
        %331 = vset.pattern.permute.xlu0 0
        %332 = vperm.xlu0 %331, %v290
        %v333 = vpop.permute.xlu0 %332
        %336 = vset.pattern.permute.xlu0 0
        %337 = vperm.xlu0 %336, %v291
        %v338 = vpop.permute.xlu0 %337
        %341 = vset.pattern.permute.xlu0 0
        %342 = vperm.xlu0 %341, %v292
        %v343 = vpop.permute.xlu0 %342
        %346 = vset.pattern.permute.xlu0 0
        %347 = vperm.xlu0 %346, %v293
        %v348 = vpop.permute.xlu0 %347
        %351 = vset.pattern.permute.xlu0 0
        %352 = vperm.xlu0 %351, %v294
        %v353 = vpop.permute.xlu0 %352
        %356 = vset.pattern.permute.xlu0 0
        %357 = vperm.xlu0 %356, %v295
        %v358 = vpop.permute.xlu0 %357
        %361 = vset.pattern.permute.xlu0 0
        %362 = vperm.xlu0 %361, %v296
        %v363 = vpop.permute.xlu0 %362
        %366 = vset.pattern.permute.xlu0 0
        %367 = vperm.xlu0 %366, %v297
        %v368 = vpop.permute.xlu0 %367
        %371 = vset.pattern.permute.xlu0 0
        %372 = vperm.xlu0 %371, %v298
        %v373 = vpop.permute.xlu0 %372
        %376 = vset.pattern.permute.xlu0 0
        %377 = vperm.xlu0 %376, %v299
        %v378 = vpop.permute.xlu0 %377
        %381 = vset.pattern.permute.xlu0 0
        %382 = vperm.xlu0 %381, %v300
        %v383 = vpop.permute.xlu0 %382
        %386 = vset.pattern.permute.xlu0 0
        %387 = vperm.xlu0 %386, %v301
        %v388 = vpop.permute.xlu0 %387
        %391 = vset.pattern.permute.xlu0 0
        %392 = vperm.xlu0 %391, %v302
        %v393 = vpop.permute.xlu0 %392
        %396 = vset.pattern.permute.xlu0 0
        %397 = vperm.xlu0 %396, %v303
        %v398 = vpop.permute.xlu0 %397
        %401 = vset.pattern.permute.xlu0 0
        %402 = vperm.xlu0 %401, %v304
        %v403 = vpop.permute.xlu0 %402
        %406 = vset.pattern.permute.xlu0 0
        %407 = vperm.xlu0 %406, %v305
        %v408 = vpop.permute.xlu0 %407
        %411 = vset.pattern.permute.xlu0 0
        %412 = vperm.xlu0 %411, %v306
        %v413 = vpop.permute.xlu0 %412
        %416 = vset.pattern.permute.xlu0 0
        %417 = vperm.xlu0 %416, %v307
        %v418 = vpop.permute.xlu0 %417
        %421 = vset.pattern.permute.xlu0 0
        %422 = vperm.xlu0 %421, %v308
        %v423 = vpop.permute.xlu0 %422
        %426 = vset.pattern.permute.xlu0 0
        %427 = vperm.xlu0 %426, %v309
        %v428 = vpop.permute.xlu0 %427
        %vm430 = vcmask 261120
        %v432 = vsel %vm430, %v262, 0
        %v435 = vsel %vm430, %v263, 0
        %v438 = vsel %vm430, %v264, 0
        %v441 = vsel %vm430, %v265, 0
        %v444 = vsel %vm430, %v266, 0
        %v447 = vsel %vm430, %v267, 0
        %v450 = vsel %vm430, %v268, 0
        %v453 = vsel %vm430, %v269, 0
        %v456 = vsel %vm430, %v270, 0
        %v459 = vsel %vm430, %v271, 0
        %v462 = vsel %vm430, %v272, 0
        %v465 = vsel %vm430, %v273, 0
        %v468 = vsel %vm430, %v274, 0
        %v471 = vsel %vm430, %v275, 0
        %v474 = vsel %vm430, %v276, 0
        %v477 = vsel %vm430, %v277, 0
        %v480 = vsel %vm430, %v278, 0
        %v483 = vsel %vm430, %v279, 0
        %v486 = vsel %vm430, %v280, 0
        %v489 = vsel %vm430, %v281, 0
        %v492 = vsel %vm430, %v282, 0
        %v495 = vsel %vm430, %v283, 0
        %v498 = vsel %vm430, %v284, 0
        %v501 = vsel %vm430, %v285, 0
        %503 = vmatpush.msra.mxu0 0.0
        %504 = vmatpush.msra.mxu0 0.0
        %505 = vmatpush.msra.mxu0 0.0
        %506 = vmatpush.msra.mxu0 0.0
        %507 = vmatpush.msra.mxu0 0.0
        %508 = vmatpush.msra.mxu0 0.0
        %509 = vmatpush.msra.mxu0 0.0
        %510 = vmatpush.msra.mxu0 0.0
        %511 = vmatpush.msra.mxu0 0.0
        %512 = vmatpush.msra.mxu0 0.0
        %513 = vmatpush.msra.mxu0 0.0
        %514 = vmatpush.msra.mxu0 0.0
        %515 = vmatpush.msra.mxu0 %v260
        %516 = vmatpush.msra.mxu0 %v258
        %517 = vmatpush.msra.mxu0 %v256
        %518 = vmatpush.msra.mxu0 %v254
        %519 = vmatmul.f32.gmra.mxu0 %v432
        %v520 = vpop.f32.mrf.mxu0
        %v521 = vadd.f32 %v313, %v520
        %522 = vmatmul.f32.gmra.mxu0 %v435
        %v523 = vpop.f32.mrf.mxu0
        %v524 = vadd.f32 %v318, %v523
        %525 = vmatmul.f32.gmra.mxu0 %v438
        %v526 = vpop.f32.mrf.mxu0
        %v527 = vadd.f32 %v323, %v526
        %528 = vmatmul.f32.gmra.mxu0 %v441
        %v529 = vpop.f32.mrf.mxu0
        %v530 = vadd.f32 %v328, %v529
        %531 = vmatmul.f32.gmra.mxu0 %v444
        %v532 = vpop.f32.mrf.mxu0
        %v533 = vadd.f32 %v333, %v532
        %534 = vmatmul.f32.gmra.mxu0 %v447
        %v535 = vpop.f32.mrf.mxu0
        %v536 = vadd.f32 %v338, %v535
        %537 = vmatmul.f32.gmra.mxu0 %v450
        %v538 = vpop.f32.mrf.mxu0
        %v539 = vadd.f32 %v343, %v538
        %540 = vmatmul.f32.gmra.mxu0 %v453
        %v541 = vpop.f32.mrf.mxu0
        %v542 = vadd.f32 %v348, %v541
        %543 = vmatmul.f32.gmra.mxu0 %v456
        %v544 = vpop.f32.mrf.mxu0
        %v545 = vadd.f32 %v353, %v544
        %546 = vmatmul.f32.gmra.mxu0 %v459
        %v547 = vpop.f32.mrf.mxu0
        %v548 = vadd.f32 %v358, %v547
        %549 = vmatmul.f32.gmra.mxu0 %v462
        %v550 = vpop.f32.mrf.mxu0
        %v551 = vadd.f32 %v363, %v550
        %552 = vmatmul.f32.gmra.mxu0 %v465
        %v553 = vpop.f32.mrf.mxu0
        %v554 = vadd.f32 %v368, %v553
        %555 = vmatmul.f32.gmra.mxu0 %v468
        %v556 = vpop.f32.mrf.mxu0
        %v557 = vadd.f32 %v373, %v556
        %558 = vmatmul.f32.gmra.mxu0 %v471
        %v559 = vpop.f32.mrf.mxu0
        %v560 = vadd.f32 %v378, %v559
        %561 = vmatmul.f32.gmra.mxu0 %v474
        %v562 = vpop.f32.mrf.mxu0
        %v563 = vadd.f32 %v383, %v562
        %564 = vmatmul.f32.gmra.mxu0 %v477
        %v565 = vpop.f32.mrf.mxu0
        %v566 = vadd.f32 %v388, %v565
        %567 = vmatmul.f32.gmra.mxu0 %v480
        %v568 = vpop.f32.mrf.mxu0
        %v569 = vadd.f32 %v393, %v568
        %570 = vmatmul.f32.gmra.mxu0 %v483
        %v571 = vpop.f32.mrf.mxu0
        %v572 = vadd.f32 %v398, %v571
        %573 = vmatmul.f32.gmra.mxu0 %v486
        %v574 = vpop.f32.mrf.mxu0
        %v575 = vadd.f32 %v403, %v574
        %576 = vmatmul.f32.gmra.mxu0 %v489
        %v577 = vpop.f32.mrf.mxu0
        %v578 = vadd.f32 %v408, %v577
        %579 = vmatmul.f32.gmra.mxu0 %v492
        %v580 = vpop.f32.mrf.mxu0
        %v581 = vadd.f32 %v413, %v580
        %582 = vmatmul.f32.gmra.mxu0 %v495
        %v583 = vpop.f32.mrf.mxu0
        %v584 = vadd.f32 %v418, %v583
        %585 = vmatmul.f32.gmra.mxu0 %v498
        %v586 = vpop.f32.mrf.mxu0
        %v587 = vadd.f32 %v423, %v586
        %588 = vmatmul.f32.gmra.mxu0 %v501
        %v589 = vpop.f32.mrf.mxu0
        %v590 = vadd.f32 %v428, %v589
        %591 = vdwg.mxu0
        %592 = vmatpush.msra.mxu0 0.0
        %593 = vmatpush.msra.mxu0 0.0
        %594 = vmatpush.msra.mxu0 0.0
        %595 = vmatpush.msra.mxu0 0.0
        %596 = vmatpush.msra.mxu0 0.0
        %597 = vmatpush.msra.mxu0 0.0
        %598 = vmatpush.msra.mxu0 0.0
        %599 = vmatpush.msra.mxu0 0.0
        %600 = vmatpush.msra.mxu0 0.0
        %601 = vmatpush.msra.mxu0 0.0
        %602 = vmatpush.msra.mxu0 0.0
        %603 = vmatpush.msra.mxu0 0.0
        %604 = vmatpush.msra.mxu0 %v261
        %605 = vmatpush.msra.mxu0 %v259
        %606 = vmatpush.msra.mxu0 %v257
        %607 = vmatpush.msra.mxu0 %v255
        %608 = vmatmul.f32.gmra.mxu0 %v432
        %v609 = vpop.f32.mrf.mxu0
        %v610 = vadd.f32 %v313, %v609
        %611 = vmatmul.f32.gmra.mxu0 %v435
        %v612 = vpop.f32.mrf.mxu0
        %v613 = vadd.f32 %v318, %v612
        %614 = vmatmul.f32.gmra.mxu0 %v438
        %v615 = vpop.f32.mrf.mxu0
        %v616 = vadd.f32 %v323, %v615
        %617 = vmatmul.f32.gmra.mxu0 %v441
        %v618 = vpop.f32.mrf.mxu0
        %v619 = vadd.f32 %v328, %v618
        %620 = vmatmul.f32.gmra.mxu0 %v444
        %v621 = vpop.f32.mrf.mxu0
        %v622 = vadd.f32 %v333, %v621
        %623 = vmatmul.f32.gmra.mxu0 %v447
        %v624 = vpop.f32.mrf.mxu0
        %v625 = vadd.f32 %v338, %v624
        %626 = vmatmul.f32.gmra.mxu0 %v450
        %v627 = vpop.f32.mrf.mxu0
        %v628 = vadd.f32 %v343, %v627
        %629 = vmatmul.f32.gmra.mxu0 %v453
        %v630 = vpop.f32.mrf.mxu0
        %v631 = vadd.f32 %v348, %v630
        %632 = vmatmul.f32.gmra.mxu0 %v456
        %v633 = vpop.f32.mrf.mxu0
        %v634 = vadd.f32 %v353, %v633
        %635 = vmatmul.f32.gmra.mxu0 %v459
        %v636 = vpop.f32.mrf.mxu0
        %v637 = vadd.f32 %v358, %v636
        %638 = vmatmul.f32.gmra.mxu0 %v462
        %v639 = vpop.f32.mrf.mxu0
        %v640 = vadd.f32 %v363, %v639
        %641 = vmatmul.f32.gmra.mxu0 %v465
        %v642 = vpop.f32.mrf.mxu0
        %v643 = vadd.f32 %v368, %v642
        %644 = vmatmul.f32.gmra.mxu0 %v468
        %v645 = vpop.f32.mrf.mxu0
        %v646 = vadd.f32 %v373, %v645
        %647 = vmatmul.f32.gmra.mxu0 %v471
        %v648 = vpop.f32.mrf.mxu0
        %v649 = vadd.f32 %v378, %v648
        %650 = vmatmul.f32.gmra.mxu0 %v474
        %v651 = vpop.f32.mrf.mxu0
        %v652 = vadd.f32 %v383, %v651
        %653 = vmatmul.f32.gmra.mxu0 %v477
        %v654 = vpop.f32.mrf.mxu0
        %v655 = vadd.f32 %v388, %v654
        %656 = vmatmul.f32.gmra.mxu0 %v480
        %v657 = vpop.f32.mrf.mxu0
        %v658 = vadd.f32 %v393, %v657
        %659 = vmatmul.f32.gmra.mxu0 %v483
        %v660 = vpop.f32.mrf.mxu0
        %v661 = vadd.f32 %v398, %v660
        %662 = vmatmul.f32.gmra.mxu0 %v486
        %v663 = vpop.f32.mrf.mxu0
        %v664 = vadd.f32 %v403, %v663
        %665 = vmatmul.f32.gmra.mxu0 %v489
        %v666 = vpop.f32.mrf.mxu0
        %v667 = vadd.f32 %v408, %v666
        %668 = vmatmul.f32.gmra.mxu0 %v492
        %v669 = vpop.f32.mrf.mxu0
        %v670 = vadd.f32 %v413, %v669
        %671 = vmatmul.f32.gmra.mxu0 %v495
        %v672 = vpop.f32.mrf.mxu0
        %v673 = vadd.f32 %v418, %v672
        %674 = vmatmul.f32.gmra.mxu0 %v498
        %v675 = vpop.f32.mrf.mxu0
        %v676 = vadd.f32 %v423, %v675
        %677 = vmatmul.f32.gmra.mxu0 %v501
        %v678 = vpop.f32.mrf.mxu0
        %v679 = vadd.f32 %v428, %v678
        %680 = vdwg.mxu0
        %v681 = vmax.f32 %v521, 0.0
        %v682 = vmax.f32 %v610, 0.0
        %v683 = vmax.f32 %v524, 0.0
        %v684 = vmax.f32 %v613, 0.0
        %v685 = vmax.f32 %v527, 0.0
        %v686 = vmax.f32 %v616, 0.0
        %v687 = vmax.f32 %v530, 0.0
        %v688 = vmax.f32 %v619, 0.0
        %v689 = vmax.f32 %v533, 0.0
        %v690 = vmax.f32 %v622, 0.0
        %v691 = vmax.f32 %v536, 0.0
        %v692 = vmax.f32 %v625, 0.0
        %v693 = vmax.f32 %v539, 0.0
        %v694 = vmax.f32 %v628, 0.0
        %v695 = vmax.f32 %v542, 0.0
        %v696 = vmax.f32 %v631, 0.0
        %v697 = vmax.f32 %v545, 0.0
        %v698 = vmax.f32 %v634, 0.0
        %v699 = vmax.f32 %v548, 0.0
        %v700 = vmax.f32 %v637, 0.0
        %v701 = vmax.f32 %v551, 0.0
        %v702 = vmax.f32 %v640, 0.0
        %v703 = vmax.f32 %v554, 0.0
        %v704 = vmax.f32 %v643, 0.0
        %v705 = vmax.f32 %v557, 0.0
        %v706 = vmax.f32 %v646, 0.0
        %v707 = vmax.f32 %v560, 0.0
        %v708 = vmax.f32 %v649, 0.0
        %v709 = vmax.f32 %v563, 0.0
        %v710 = vmax.f32 %v652, 0.0
        %v711 = vmax.f32 %v566, 0.0
        %v712 = vmax.f32 %v655, 0.0
        %v713 = vmax.f32 %v569, 0.0
        %v714 = vmax.f32 %v658, 0.0
        %v715 = vmax.f32 %v572, 0.0
        %v716 = vmax.f32 %v661, 0.0
        %v717 = vmax.f32 %v575, 0.0
        %v718 = vmax.f32 %v664, 0.0
        %v719 = vmax.f32 %v578, 0.0
        %v720 = vmax.f32 %v667, 0.0
        %v721 = vmax.f32 %v581, 0.0
        %v722 = vmax.f32 %v670, 0.0
        %v723 = vmax.f32 %v584, 0.0
        %v724 = vmax.f32 %v673, 0.0
        %v725 = vmax.f32 %v587, 0.0
        %v726 = vmax.f32 %v676, 0.0
        %v727 = vmax.f32 %v590, 0.0
        %v728 = vmax.f32 %v679, 0.0
        %v729 = vld [vmem:[%s3] sm:$0xff]
        %v730 = vld [vmem:[%s3 + $0x8] sm:$0xff]
        %v731 = vld [vmem:[%s3 + $0x10] sm:$0xff]
        %v732 = vld [vmem:[%s3 + $0x18] sm:$0xff]
        %v733 = vld [vmem:[%s4] sm:$0xff]
        %v734 = vld [vmem:[%s4 + $0x8] sm:$0xff]
        %736 = vset.pattern.permute.xlu0 0
        %737 = vperm.xlu0 %736, %v733
        %v738 = vpop.permute.xlu0 %737
        %741 = vset.pattern.permute.xlu0 0
        %742 = vperm.xlu0 %741, %v734
        %v743 = vpop.permute.xlu0 %742
        %vm745 = vcmask 523264
        %v747 = vsel %vm745, %v730, 0
        %v750 = vsel %vm745, %v732, 0
        %752 = vmatpush.msra.mxu0 %v711
        %753 = vmatpush.msra.mxu0 %v709
        %754 = vmatpush.msra.mxu0 %v707
        %755 = vmatpush.msra.mxu0 %v705
        %756 = vmatpush.msra.mxu0 %v703
        %757 = vmatpush.msra.mxu0 %v701
        %758 = vmatpush.msra.mxu0 %v699
        %759 = vmatpush.msra.mxu0 %v697
        %760 = vmatpush.msra.mxu0 %v695
        %761 = vmatpush.msra.mxu0 %v693
        %762 = vmatpush.msra.mxu0 %v691
        %763 = vmatpush.msra.mxu0 %v689
        %764 = vmatpush.msra.mxu0 %v687
        %765 = vmatpush.msra.mxu0 %v685
        %766 = vmatpush.msra.mxu0 %v683
        %767 = vmatpush.msra.mxu0 %v681
        %768 = vmatmul.f32.gmra.mxu0 %v729
        %v769 = vpop.f32.mrf.mxu0
        %v770 = vadd.f32 %v738, %v769
        %771 = vmatmul.f32.gmra.mxu0 %v731
        %v772 = vpop.f32.mrf.mxu0
        %v773 = vadd.f32 %v743, %v772
        %774 = vdwg.mxu0
        %775 = vmatpush.msra.mxu0 0.0
        %776 = vmatpush.msra.mxu0 0.0
        %777 = vmatpush.msra.mxu0 0.0
        %778 = vmatpush.msra.mxu0 0.0
        %779 = vmatpush.msra.mxu0 0.0
        %780 = vmatpush.msra.mxu0 0.0
        %781 = vmatpush.msra.mxu0 0.0
        %782 = vmatpush.msra.mxu0 0.0
        %783 = vmatpush.msra.mxu0 %v727
        %784 = vmatpush.msra.mxu0 %v725
        %785 = vmatpush.msra.mxu0 %v723
        %786 = vmatpush.msra.mxu0 %v721
        %787 = vmatpush.msra.mxu0 %v719
        %788 = vmatpush.msra.mxu0 %v717
        %789 = vmatpush.msra.mxu0 %v715
        %790 = vmatpush.msra.mxu0 %v713
        %791 = vmatmul.f32.gmra.mxu0 %v747
        %v792 = vpop.f32.mrf.mxu0
        %v793 = vadd.f32 %v770, %v792
        %794 = vmatmul.f32.gmra.mxu0 %v750
        %v795 = vpop.f32.mrf.mxu0
        %v796 = vadd.f32 %v773, %v795
        %797 = vdwg.mxu0
        %798 = vmatpush.msra.mxu0 %v712
        %799 = vmatpush.msra.mxu0 %v710
        %800 = vmatpush.msra.mxu0 %v708
        %801 = vmatpush.msra.mxu0 %v706
        %802 = vmatpush.msra.mxu0 %v704
        %803 = vmatpush.msra.mxu0 %v702
        %804 = vmatpush.msra.mxu0 %v700
        %805 = vmatpush.msra.mxu0 %v698
        %806 = vmatpush.msra.mxu0 %v696
        %807 = vmatpush.msra.mxu0 %v694
        %808 = vmatpush.msra.mxu0 %v692
        %809 = vmatpush.msra.mxu0 %v690
        %810 = vmatpush.msra.mxu0 %v688
        %811 = vmatpush.msra.mxu0 %v686
        %812 = vmatpush.msra.mxu0 %v684
        %813 = vmatpush.msra.mxu0 %v682
        %814 = vmatmul.f32.gmra.mxu0 %v729
        %v815 = vpop.f32.mrf.mxu0
        %v816 = vadd.f32 %v738, %v815
        %817 = vmatmul.f32.gmra.mxu0 %v731
        %v818 = vpop.f32.mrf.mxu0
        %v819 = vadd.f32 %v743, %v818
        %820 = vdwg.mxu0
        %821 = vmatpush.msra.mxu0 0.0
        %822 = vmatpush.msra.mxu0 0.0
        %823 = vmatpush.msra.mxu0 0.0
        %824 = vmatpush.msra.mxu0 0.0
        %825 = vmatpush.msra.mxu0 0.0
        %826 = vmatpush.msra.mxu0 0.0
        %827 = vmatpush.msra.mxu0 0.0
        %828 = vmatpush.msra.mxu0 0.0
        %829 = vmatpush.msra.mxu0 %v728
        %830 = vmatpush.msra.mxu0 %v726
        %831 = vmatpush.msra.mxu0 %v724
        %832 = vmatpush.msra.mxu0 %v722
        %833 = vmatpush.msra.mxu0 %v720
        %834 = vmatpush.msra.mxu0 %v718
        %835 = vmatpush.msra.mxu0 %v716
        %836 = vmatpush.msra.mxu0 %v714
        %837 = vmatmul.f32.gmra.mxu0 %v747
        %v838 = vpop.f32.mrf.mxu0
        %v839 = vadd.f32 %v816, %v838
        %840 = vmatmul.f32.gmra.mxu0 %v750
        %v841 = vpop.f32.mrf.mxu0
        %v842 = vadd.f32 %v819, %v841
        %843 = vdwg.mxu0
        %844 = vst [vmem:[%s242] sm:$0xff] %v793
        %845 = vst [vmem:[%s242 + $0x8] sm:$0xff] %v839
        %846 = vst [vmem:[%s242 + $0x10] sm:$0xff] %v796
        %847 = vst [vmem:[%s242 + $0x18] sm:$0xff] %v842
        %s848 = sand.u32 %s153, 1
        %s849 = scalar_lea.sflag [#allocation3], %s848
        %s850 = sand.u32 %s153, 1
        %s851 = smul.addr %s850, 32
        %s852 = scalar_lea.vmem [#allocation2], %s851
        // Predicated region
        $region41: #{tpu_custom_call.1} parent=39 // pred_check
          %p853 = pneg %p163
        $region42: #{tpu_custom_call.1} parent=39 // pred_check_branch
          %855 = sbr.rel (%p853) target = $region44
        $region43: #{tpu_custom_call.1} parent=39 // pred_region
          %s856 = smul.u32 2, %s23
          %858 = vsyncadd %s849, 0
          %s859 = smul.addr %s24, 4
          %s860 = sadd.s32 %s856, %s859
          %s861 = smul.addr %s860, 8
          %s862 = scalar_lea.hbm %s5, %s861
          %s863 = sshll.u32 %s852, 4
          %s864 = int_to_ptr.vmem [resolvable:$true] %s863
          %s865 = sshll.u32 %s862, 4
          %s866 = int_to_ptr.hbm [resolvable:$true] %s865
          %871 = dma.vmem_to_hbm [thread:$0]  %s864, 512, %s866, %s849, 256, 256, 16
        $region44: #{tpu_custom_call.1} parent=39 // pred_fallthru
          _
      $region40: #{tpu_custom_call.1} parent=5 // pred_fallthru
        _
      %p872 = scmp.le.s32.totalorder 2, %s14
      // Predicated region
      $region45: #{tpu_custom_call.1} parent=5 // pred_check
        %p873 = pneg %p872
      $region46: #{tpu_custom_call.1} parent=5 // pred_check_branch
        %875 = sbr.rel (%p873) target = $region48
      $region47: #{tpu_custom_call.1} parent=5 // pred_region
        %s876 = ssub.s32 %s14, 2
        // Predicated region
        $region49: #{tpu_custom_call.1} parent=47 // pred_check
          %p877 = pneg %p169
        $region50: #{tpu_custom_call.1} parent=47 // pred_check_branch
          %879 = sbr.rel (%p877) target = $region52
        $region51: #{tpu_custom_call.1} parent=47 // pred_region
          %s880 = sand.u32 %s154, 1
          %s881 = scalar_lea.sflag [#allocation3], %s880
          %s882 = sand.u32 %s154, 1
          %s883 = smul.addr %s882, 32
          %s884 = scalar_lea.vmem [#allocation2], %s883
          %886 = dma.done %s881, 512
        $region52: #{tpu_custom_call.1} parent=47 // pred_fallthru
          _
      $region48: #{tpu_custom_call.1} parent=5 // pred_fallthru
        _
    $region6: #{tpu_custom_call.1} parent=1 // loop_footer
      %s18 = sadd.s32 1, %s14
    $region7: #{tpu_custom_call.1} parent=1 // loop_footer_branch
      %13 = sbr.rel target = $region3
    $region8: #{tpu_custom_call.1} parent=1 // loop_exit
      _
    %887 = vsyncpa [#allocation3], 1
    %s888 = scalar_lea.sflag [#allocation3], 1
    %889 = vsyncpa %s888, 1

</llo_original>
